<compile_context>
chip_gen: v5e
topology: v5e:2x2
jax: 0.10.0
libtpu: 0.0.40
codegen_flags: <defaults>
</compile_context>

<pallas_src>
import jax
import jax.numpy as jnp
from jax import lax
from jax.experimental import pallas as pl
from jax.experimental.pallas import tpu as pltpu

IN_F = 6           # real input features
K_IN = 8           # input features padded to a full sublane tile
HIDDEN = 20
OUT_F = 7          # real output features
OUT_P = 8          # padded output rows (full sublane tile)
N_LAYERS = 5
P = 24             # padded hidden feature dim (>= 20, multiple of 8)
CHUNK = 512        # lane sub-chunk kept register-resident across layers
DEFAULT_TB = 8192  # batch tile on the lane axis (multiple of CHUNK)


def awann_kernel(x_ref, w_ref, b_ref, o_ref):
    """x_ref: (K_IN, TB)  w_ref: (5, P, P)  b_ref: (5, P, 1)  o_ref: (OUT_P, TB).

    Weights/biases are zero-padded: padded rows/cols stay at tanh(0) = 0, so
    the padded math matches the unpadded MLP exactly.
    """
    # Resident params, hoisted out of the chunk loop (loaded once per step).
    w1 = w_ref[0][:, :K_IN]       # (P, 8)   cols >= 6 are zero
    b1 = b_ref[0]                 # (P, 1)
    w2, b2 = w_ref[1], b_ref[1]   # (P, P), (P, 1)
    w3, b3 = w_ref[2], b_ref[2]
    w4, b4 = w_ref[3], b_ref[3]
    w5 = w_ref[4][:OUT_P, :]      # (8, P)   row 7 is zero
    b5 = b_ref[4][:OUT_P, :]      # (8, 1)

    n_chunks = x_ref.shape[1] // CHUNK   # static

    def chunk_body(c, carry):
        j = pl.multiple_of(c * CHUNK, CHUNK)
        h = x_ref[:, pl.ds(j, CHUNK)]                                           # (8, C)
        h = jnp.tanh(jnp.dot(w1, h, preferred_element_type=jnp.float32) + b1)   # (P, C)
        h = jnp.tanh(jnp.dot(w2, h, preferred_element_type=jnp.float32) + b2)
        h = jnp.tanh(jnp.dot(w3, h, preferred_element_type=jnp.float32) + b3)
        h = jnp.tanh(jnp.dot(w4, h, preferred_element_type=jnp.float32) + b4)
        h = jnp.tanh(jnp.dot(w5, h, preferred_element_type=jnp.float32) + b5)   # (8, C)
        o_ref[:, pl.ds(j, CHUNK)] = h.astype(o_ref.dtype)   # lane-dense, unmasked
        return carry

    lax.fori_loop(0, n_chunks, chunk_body, 0, unroll=True)


def _pack_params(params):
    """Pack torch-layout (out, in) weights + biases into zero-padded slabs."""
    w_slab = jnp.zeros((N_LAYERS, P, P), jnp.float32)
    b_slab = jnp.zeros((N_LAYERS, P, 1), jnp.float32)
    for i, (w, b) in enumerate(params):
        out_f, in_f = w.shape
        w_slab = w_slab.at[i, :out_f, :in_f].set(w.astype(jnp.float32))
        b_slab = b_slab.at[i, :out_f, 0].set(b.astype(jnp.float32))
    return w_slab, b_slab


def awann_forward(x, params, *, tb=DEFAULT_TB):
    """x: (B, 6) float32; params: list of (W, b) with W in torch (out, in) layout.

    Returns (B, 7) float32, identical math to the torch module.
    """
    B = x.shape[0]
    # Batch tile on the lane axis: a multiple of CHUNK, and small enough that
    # the grid keeps >= 2 parallel steps whenever the batch allows it (v7x
    # shards the "parallel" axis across its two TensorCores).
    tb = max(CHUNK, min(tb, pl.cdiv(B, 2 * CHUNK) * CHUNK))
    bp = pl.cdiv(B, tb) * tb
    grid = (bp // tb,)

    # Single pad+transpose pass: (B, 6) -> (8, bp); padded rows/cols are zero.
    xt = jnp.pad(x.astype(jnp.float32).T, ((0, K_IN - IN_F), (0, bp - B)))
    w_slab, b_slab = _pack_params(params)

    out_t = pl.pallas_call(
        awann_kernel,
        out_shape=jax.ShapeDtypeStruct((OUT_P, bp), jnp.float32),
        grid=grid,
        in_specs=[
            pl.BlockSpec((K_IN, tb), lambda i: (0, i)),            # x batch tile
            pl.BlockSpec((N_LAYERS, P, P), lambda i: (0, 0, 0)),   # resident weights
            pl.BlockSpec((N_LAYERS, P, 1), lambda i: (0, 0, 0)),   # resident biases
        ],
        out_specs=pl.BlockSpec((OUT_P, tb), lambda i: (0, i)),
        compiler_params=pltpu.CompilerParams(
            dimension_semantics=("parallel",)),
    )(xt, w_slab, b_slab)

    # TODO(synk): if the consumer can accept (7, B) directly, drop this
    # transpose and slice to save one small HBM pass over the result.
    return out_t[:OUT_F, :B].T


def init_params(key):
    """Deterministic init; shapes / init range match nn.Linear defaults."""
    sizes = [(IN_F, HIDDEN), (HIDDEN, HIDDEN), (HIDDEN, HIDDEN),
             (HIDDEN, HIDDEN), (HIDDEN, OUT_F)]
    params = []
    for (fan_in, fan_out) in sizes:
        key, kw, kb = jax.random.split(key, 3)
        bound = 1.0 / jnp.sqrt(fan_in)
        w = jax.random.uniform(kw, (fan_out, fan_in), jnp.float32,
                               minval=-bound, maxval=bound)   # torch (out, in)
        b = jax.random.uniform(kb, (fan_out,), jnp.float32,
                               minval=-bound, maxval=bound)
        params.append((w, b))
    return params


def reference_forward(x, params):
    h = x
    for (w, b) in params:
        h = jnp.tanh(h @ w.T + b)
    return h


if __name__ == "__main__":
    key = jax.random.PRNGKey(0)
    kx, kp = jax.random.split(key)
    params = init_params(kp)

    # Small primary case (matches the module's natural usage).
    B = 8
    x = jax.random.normal(kx, (B, IN_F), jnp.float32)
    out = jax.block_until_ready(awann_forward(x, params))
    ref = reference_forward(x, params)
    assert out.shape == (B, OUT_F)
    assert jnp.allclose(out, ref, atol=1e-5, rtol=1e-5)

    # Secondary case exercising multiple grid steps, chunk loop and tail pad.
    B2 = 1200
    x2 = jax.random.normal(jax.random.PRNGKey(1), (B2, IN_F), jnp.float32)
    out2 = jax.block_until_ready(awann_forward(x2, params))
    ref2 = reference_forward(x2, params)
    assert out2.shape == (B2, OUT_F)
    assert jnp.allclose(out2, ref2, atol=1e-5, rtol=1e-5)

    print("KERNEL_OK")
</pallas_src>

<mosaic_0001>
module attributes {stable_mosaic.version = 11 : i64} {
  func.func @awann_kernel(%arg0: i32, %arg1: memref<8x512xf32, #tpu.memory_space<vmem>>, %arg2: memref<5x24x24xf32, #tpu.memory_space<vmem>>, %arg3: memref<5x24x1xf32, #tpu.memory_space<vmem>>, %arg4: memref<8x512xf32, #tpu.memory_space<vmem>>) attributes {dimension_semantics = [#tpu.dimension_semantics<parallel>], iteration_bounds = array<i64: 1>, scalar_prefetch = 0 : i64, scratch_operands = 0 : i64, tpu.core_type = #tpu.core_type<tc>, window_params = [{transform_indices = @transform_0, window_bounds = array<i64: 8, 512>}, {pipeline_mode = #tpu.pipeline_mode<synchronous>, transform_indices = @transform_1, window_bounds = array<i64: 5, 24, 24>}, {pipeline_mode = #tpu.pipeline_mode<synchronous>, transform_indices = @transform_2, window_bounds = array<i64: 5, 24, 1>}, {transform_indices = @transform_3, window_bounds = array<i64: 8, 512>}]} {
    %c0 = arith.constant 0 : index
    %c0_0 = arith.constant 0 : index
    %c0_1 = arith.constant 0 : index
    %0 = vector.load %arg2[%c0, %c0_0, %c0_1] : memref<5x24x24xf32, #tpu.memory_space<vmem>>, vector<1x24x24xf32>
    %1 = vector.shape_cast %0 : vector<1x24x24xf32> to vector<24x24xf32>
    %2 = vector.extract_strided_slice %1 {offsets = [0, 0], sizes = [24, 8], strides = [1, 1]} : vector<24x24xf32> to vector<24x8xf32>
    %c0_2 = arith.constant 0 : index
    %c0_3 = arith.constant 0 : index
    %c0_4 = arith.constant 0 : index
    %3 = vector.load %arg3[%c0_2, %c0_3, %c0_4] : memref<5x24x1xf32, #tpu.memory_space<vmem>>, vector<1x24x1xf32>
    %4 = vector.shape_cast %3 : vector<1x24x1xf32> to vector<24x1xf32>
    %c1 = arith.constant 1 : index
    %c0_5 = arith.constant 0 : index
    %c0_6 = arith.constant 0 : index
    %5 = vector.load %arg2[%c1, %c0_5, %c0_6] : memref<5x24x24xf32, #tpu.memory_space<vmem>>, vector<1x24x24xf32>
    %6 = vector.shape_cast %5 : vector<1x24x24xf32> to vector<24x24xf32>
    %c1_7 = arith.constant 1 : index
    %c0_8 = arith.constant 0 : index
    %c0_9 = arith.constant 0 : index
    %7 = vector.load %arg3[%c1_7, %c0_8, %c0_9] : memref<5x24x1xf32, #tpu.memory_space<vmem>>, vector<1x24x1xf32>
    %8 = vector.shape_cast %7 : vector<1x24x1xf32> to vector<24x1xf32>
    %c2 = arith.constant 2 : index
    %c0_10 = arith.constant 0 : index
    %c0_11 = arith.constant 0 : index
    %9 = vector.load %arg2[%c2, %c0_10, %c0_11] : memref<5x24x24xf32, #tpu.memory_space<vmem>>, vector<1x24x24xf32>
    %10 = vector.shape_cast %9 : vector<1x24x24xf32> to vector<24x24xf32>
    %c2_12 = arith.constant 2 : index
    %c0_13 = arith.constant 0 : index
    %c0_14 = arith.constant 0 : index
    %11 = vector.load %arg3[%c2_12, %c0_13, %c0_14] : memref<5x24x1xf32, #tpu.memory_space<vmem>>, vector<1x24x1xf32>
    %12 = vector.shape_cast %11 : vector<1x24x1xf32> to vector<24x1xf32>
    %c3 = arith.constant 3 : index
    %c0_15 = arith.constant 0 : index
    %c0_16 = arith.constant 0 : index
    %13 = vector.load %arg2[%c3, %c0_15, %c0_16] : memref<5x24x24xf32, #tpu.memory_space<vmem>>, vector<1x24x24xf32>
    %14 = vector.shape_cast %13 : vector<1x24x24xf32> to vector<24x24xf32>
    %c3_17 = arith.constant 3 : index
    %c0_18 = arith.constant 0 : index
    %c0_19 = arith.constant 0 : index
    %15 = vector.load %arg3[%c3_17, %c0_18, %c0_19] : memref<5x24x1xf32, #tpu.memory_space<vmem>>, vector<1x24x1xf32>
    %16 = vector.shape_cast %15 : vector<1x24x1xf32> to vector<24x1xf32>
    %c4 = arith.constant 4 : index
    %c0_20 = arith.constant 0 : index
    %c0_21 = arith.constant 0 : index
    %17 = vector.load %arg2[%c4, %c0_20, %c0_21] : memref<5x24x24xf32, #tpu.memory_space<vmem>>, vector<1x24x24xf32>
    %18 = vector.shape_cast %17 : vector<1x24x24xf32> to vector<24x24xf32>
    %19 = vector.extract_strided_slice %18 {offsets = [0, 0], sizes = [8, 24], strides = [1, 1]} : vector<24x24xf32> to vector<8x24xf32>
    %c4_22 = arith.constant 4 : index
    %c0_23 = arith.constant 0 : index
    %c0_24 = arith.constant 0 : index
    %20 = vector.load %arg3[%c4_22, %c0_23, %c0_24] : memref<5x24x1xf32, #tpu.memory_space<vmem>>, vector<1x24x1xf32>
    %21 = vector.shape_cast %20 : vector<1x24x1xf32> to vector<24x1xf32>
    %22 = vector.extract_strided_slice %21 {offsets = [0, 0], sizes = [8, 1], strides = [1, 1]} : vector<24x1xf32> to vector<8x1xf32>
    %c0_i32 = arith.constant 0 : i32
    %c512_i32 = arith.constant 512 : i32
    %23 = arith.muli %c0_i32, %c512_i32 : i32
    %24 = tpu.assume_multiple %23, 512 : i32
    %c0_25 = arith.constant 0 : index
    %25 = arith.index_cast %24 : i32 to index
    %26 = vector.load %arg1[%c0_25, %25] : memref<8x512xf32, #tpu.memory_space<vmem>>, vector<8x512xf32>
    %cst = arith.constant dense<0.000000e+00> : vector<24x512xf32>
    %27 = tpu.matmul %2, %26, %cst {dimension_numbers = #tpu.dot_dimension_numbers<[1], [0], [0], [1], [0, 0, 1, 1], [], []>} : vector<24x8xf32>, vector<8x512xf32>, vector<24x512xf32> -> vector<24x512xf32>
    %28 = vector.broadcast %4 : vector<24x1xf32> to vector<24x512xf32>
    %29 = arith.addf %27, %28 : vector<24x512xf32>
    %30 = math.tanh %29 : vector<24x512xf32>
    %cst_26 = arith.constant dense<0.000000e+00> : vector<24x512xf32>
    %31 = tpu.matmul %6, %30, %cst_26 {dimension_numbers = #tpu.dot_dimension_numbers<[1], [0], [0], [1], [0, 0, 1, 1], [], []>} : vector<24x24xf32>, vector<24x512xf32>, vector<24x512xf32> -> vector<24x512xf32>
    %32 = vector.broadcast %8 : vector<24x1xf32> to vector<24x512xf32>
    %33 = arith.addf %31, %32 : vector<24x512xf32>
    %34 = math.tanh %33 : vector<24x512xf32>
    %cst_27 = arith.constant dense<0.000000e+00> : vector<24x512xf32>
    %35 = tpu.matmul %10, %34, %cst_27 {dimension_numbers = #tpu.dot_dimension_numbers<[1], [0], [0], [1], [0, 0, 1, 1], [], []>} : vector<24x24xf32>, vector<24x512xf32>, vector<24x512xf32> -> vector<24x512xf32>
    %36 = vector.broadcast %12 : vector<24x1xf32> to vector<24x512xf32>
    %37 = arith.addf %35, %36 : vector<24x512xf32>
    %38 = math.tanh %37 : vector<24x512xf32>
    %cst_28 = arith.constant dense<0.000000e+00> : vector<24x512xf32>
    %39 = tpu.matmul %14, %38, %cst_28 {dimension_numbers = #tpu.dot_dimension_numbers<[1], [0], [0], [1], [0, 0, 1, 1], [], []>} : vector<24x24xf32>, vector<24x512xf32>, vector<24x512xf32> -> vector<24x512xf32>
    %40 = vector.broadcast %16 : vector<24x1xf32> to vector<24x512xf32>
    %41 = arith.addf %39, %40 : vector<24x512xf32>
    %42 = math.tanh %41 : vector<24x512xf32>
    %cst_29 = arith.constant dense<0.000000e+00> : vector<8x512xf32>
    %43 = tpu.matmul %19, %42, %cst_29 {dimension_numbers = #tpu.dot_dimension_numbers<[1], [0], [0], [1], [0, 0, 1, 1], [], []>} : vector<8x24xf32>, vector<24x512xf32>, vector<8x512xf32> -> vector<8x512xf32>
    %44 = vector.broadcast %22 : vector<8x1xf32> to vector<8x512xf32>
    %45 = arith.addf %43, %44 : vector<8x512xf32>
    %46 = math.tanh %45 : vector<8x512xf32>
    %c0_30 = arith.constant 0 : index
    %47 = arith.index_cast %24 : i32 to index
    %48 = vector.load %arg4[%c0_30, %47] : memref<8x512xf32, #tpu.memory_space<vmem>>, vector<8x512xf32>
    tpu.vector_store %arg4[%c0_30, %47], %46 {strides = array<i32>} : memref<8x512xf32, #tpu.memory_space<vmem>>, vector<8x512xf32>,
    %c1_i32 = arith.constant 1 : i32
    return
  }
  func.func @transform_0(%arg0: i32) -> (i32, i32) {
    %c0_i32 = arith.constant 0 : i32
    %c0_i32_0 = arith.constant 0 : i32
    return %c0_i32, %arg0 : i32, i32
  }
  func.func @transform_1(%arg0: i32) -> (i32, i32, i32) {
    %c0_i32 = arith.constant 0 : i32
    %c0_i32_0 = arith.constant 0 : i32
    %c0_i32_1 = arith.constant 0 : i32
    %c0_i32_2 = arith.constant 0 : i32
    return %c0_i32, %c0_i32_0, %c0_i32_1 : i32, i32, i32
  }
  func.func @transform_2(%arg0: i32) -> (i32, i32, i32) {
    %c0_i32 = arith.constant 0 : i32
    %c0_i32_0 = arith.constant 0 : i32
    %c0_i32_1 = arith.constant 0 : i32
    %c0_i32_2 = arith.constant 0 : i32
    return %c0_i32, %c0_i32_0, %c0_i32_1 : i32, i32, i32
  }
  func.func @transform_3(%arg0: i32) -> (i32, i32) {
    %c0_i32 = arith.constant 0 : i32
    %c0_i32_0 = arith.constant 0 : i32
    return %c0_i32, %arg0 : i32, i32
  }
}

</mosaic_0001>

<llo_original>
// kernel: tpu_custom_call.1
$region0: #{tpu_custom_call.1}
  #allocation0 [shape = 'u32[]', space=smem, size = 0x4, offset = 0x4, fixed_abs, tag = 'smem constant byte address 0x4 - core index']
  #allocation1 [shape = 'u32[72,128]{1,0:T(1,128)}', space=vmem, size = 0x9000, scoped, tag = 'internal scratch']
  %s0 = inlined_call_operand.hbm [shape: f32[8,512], index: 0, kind: input, shape index: {}]
  %s1 = inlined_call_operand.vmem [shape: f32[5,24,24], index: 1, kind: input, shape index: {}]
  %s2 = inlined_call_operand.vmem [shape: f32[5,24,1], index: 2, kind: input, shape index: {}]
  %s3 = inlined_call_operand.hbm [shape: f32[8,512], index: 3, kind: output, shape index: {}]
  %s4 = sld [smem:[#allocation0]]
  $region26: #{tpu_custom_call.1} parent=0
    _
  %s6 = ssub.s32 1, %s4
  %s7 = scalar_select 0, %s6, %s4
  $region1: #{tpu_custom_call.1} parent=0
    #allocation2 [shape = 'u8[16384]{0}', space=vmem, size = 0x4000, scoped, tag = 'input window, operand 0, single buffered']
    #allocation3 [shape = 's32[1]{0}', space=sflag, size = 0x4, scoped, tag = 'scoped memory for tpu_custom_call.1']
    #allocation4 [shape = 's32[1]{0}', space=sflag, size = 0x4, scoped, tag = 'scoped memory for tpu_custom_call.1']
    #allocation5 [shape = 'u8[16384]{0}', space=vmem, size = 0x4000, scoped, tag = 'output window, operand 0, single buffered']
    %8 = vsyncpa [#allocation3], 0
    %9 = vsyncpa [#allocation4], 0
    // Predicated region
    $region2: #{tpu_custom_call.1} parent=1 // pred_check
      _
    $region3: #{tpu_custom_call.1} parent=1 // pred_check_branch
      %11 = sbr.rel (0) target = $region5
    $region4: #{tpu_custom_call.1} parent=1 // pred_region
      %13 = vsyncadd [#allocation3], 0
      %s15 = sshll.u32 %s0, 4
      %s16 = int_to_ptr.hbm [resolvable:$true] %s15
      %s17 = sshll.u32 [#allocation2], 4
      %s18 = int_to_ptr.vmem [resolvable:$true] %s17
      %20 = dma.hbm_to_vmem [thread:$0]  %s16, 512, %s18, [#allocation3]
    $region5: #{tpu_custom_call.1} parent=1 // pred_fallthru
      _
    // Predicated region
    $region6: #{tpu_custom_call.1} parent=1 // pred_check
      _
    $region7: #{tpu_custom_call.1} parent=1 // pred_check_branch
      %22 = sbr.rel (0) target = $region9
    $region8: #{tpu_custom_call.1} parent=1 // pred_region
      _
    $region9: #{tpu_custom_call.1} parent=1 // pred_fallthru
      _
    // Predicated region
    $region10: #{tpu_custom_call.1} parent=1 // pred_check
      _
    $region11: #{tpu_custom_call.1} parent=1 // pred_check_branch
      %24 = sbr.rel (0) target = $region13
    $region12: #{tpu_custom_call.1} parent=1 // pred_region
      _
    $region13: #{tpu_custom_call.1} parent=1 // pred_fallthru
      _
    // Predicated region
    $region14: #{tpu_custom_call.1} parent=1 // pred_check
      _
    $region15: #{tpu_custom_call.1} parent=1 // pred_check_branch
      %26 = sbr.rel (0) target = $region17
    $region16: #{tpu_custom_call.1} parent=1 // pred_region
      %28 = dma.done [#allocation3], 512
    $region17: #{tpu_custom_call.1} parent=1 // pred_fallthru
      _
    %v29 = vld [vmem:[%s1] sm:$0xff]
    %v30 = vld [vmem:[%s1 + $0x8] sm:$0xff]
    %v31 = vld [vmem:[%s1 + $0x10] sm:$0xff]
    %v32 = vld [vmem:[%s2] sm:$0xff]
    %v33 = vld [vmem:[%s2 + $0x8] sm:$0xff]
    %v34 = vld [vmem:[%s2 + $0x10] sm:$0xff]
    %s35 = scalar_lea.vmem %s1, 24
    %v36 = vld [vmem:[%s35] sm:$0xff]
    %v37 = vld [vmem:[%s35 + $0x8] sm:$0xff]
    %v38 = vld [vmem:[%s35 + $0x10] sm:$0xff]
    %s39 = scalar_lea.vmem %s2, 24
    %v40 = vld [vmem:[%s39] sm:$0xff]
    %v41 = vld [vmem:[%s39 + $0x8] sm:$0xff]
    %v42 = vld [vmem:[%s39 + $0x10] sm:$0xff]
    %s43 = scalar_lea.vmem %s1, 48
    %v44 = vld [vmem:[%s43] sm:$0xff]
    %v45 = vld [vmem:[%s43 + $0x8] sm:$0xff]
    %v46 = vld [vmem:[%s43 + $0x10] sm:$0xff]
    %s47 = scalar_lea.vmem %s2, 48
    %v48 = vld [vmem:[%s47] sm:$0xff]
    %v49 = vld [vmem:[%s47 + $0x8] sm:$0xff]
    %v50 = vld [vmem:[%s47 + $0x10] sm:$0xff]
    %s51 = scalar_lea.vmem %s1, 72
    %v52 = vld [vmem:[%s51] sm:$0xff]
    %v53 = vld [vmem:[%s51 + $0x8] sm:$0xff]
    %v54 = vld [vmem:[%s51 + $0x10] sm:$0xff]
    %s55 = scalar_lea.vmem %s2, 72
    %v56 = vld [vmem:[%s55] sm:$0xff]
    %v57 = vld [vmem:[%s55 + $0x8] sm:$0xff]
    %v58 = vld [vmem:[%s55 + $0x10] sm:$0xff]
    %s59 = scalar_lea.vmem %s1, 96
    %v60 = vld [vmem:[%s59] sm:$0xff]
    %s61 = scalar_lea.vmem %s2, 96
    %v62 = vld [vmem:[%s61] sm:$0xff]
    %v63 = vld [vmem:[#allocation2] sm:$0xff]
    %v64 = vld [vmem:[#allocation2 + $0x8] sm:$0xff]
    %v65 = vld [vmem:[#allocation2 + $0x10] sm:$0xff]
    %v66 = vld [vmem:[#allocation2 + $0x18] sm:$0xff]
    %68 = vset.pattern.permute.xlu0 0
    %69 = vperm.xlu0 %68, %v32
    %v70 = vpop.permute.xlu0 %69
    %73 = vset.pattern.permute.xlu0 0
    %74 = vperm.xlu0 %73, %v33
    %v75 = vpop.permute.xlu0 %74
    %78 = vset.pattern.permute.xlu0 0
    %79 = vperm.xlu0 %78, %v34
    %v80 = vpop.permute.xlu0 %79
    %vm82 = vcmask 64512
    %v84 = vsel %vm82, %v29, 0
    %v87 = vsel %vm82, %v30, 0
    %v90 = vsel %vm82, %v31, 0
    %92 = vmatpush.msra.mxu0 0.0
    %93 = vmatpush.msra.mxu0 0.0
    %94 = vmatpush.msra.mxu0 0.0
    %95 = vmatpush.msra.mxu0 0.0
    %96 = vmatpush.msra.mxu0 0.0
    %97 = vmatpush.msra.mxu0 0.0
    %98 = vmatpush.msra.mxu0 0.0
    %99 = vmatpush.msra.mxu0 0.0
    %100 = vmatpush.msra.mxu0 0.0
    %101 = vmatpush.msra.mxu0 0.0
    %102 = vmatpush.msra.mxu0 0.0
    %103 = vmatpush.msra.mxu0 0.0
    %104 = vmatpush.msra.mxu0 0.0
    %105 = vmatpush.msra.mxu0 0.0
    %106 = vmatpush.msra.mxu0 0.0
    %107 = vmatpush.msra.mxu0 %v63
    %108 = vmatmul.f32.gmra.mxu0 %v84
    %v109 = vpop.f32.mrf.mxu0
    %v110 = vadd.f32 %v70, %v109
    %111 = vmatmul.f32.gmra.mxu0 %v87
    %v112 = vpop.f32.mrf.mxu0
    %v113 = vadd.f32 %v75, %v112
    %114 = vmatmul.f32.gmra.mxu0 %v90
    %v115 = vpop.f32.mrf.mxu0
    %v116 = vadd.f32 %v80, %v115
    %117 = vdwg.mxu0
    %118 = vmatpush.msra.mxu0 0.0
    %119 = vmatpush.msra.mxu0 0.0
    %120 = vmatpush.msra.mxu0 0.0
    %121 = vmatpush.msra.mxu0 0.0
    %122 = vmatpush.msra.mxu0 0.0
    %123 = vmatpush.msra.mxu0 0.0
    %124 = vmatpush.msra.mxu0 0.0
    %125 = vmatpush.msra.mxu0 0.0
    %126 = vmatpush.msra.mxu0 0.0
    %127 = vmatpush.msra.mxu0 0.0
    %128 = vmatpush.msra.mxu0 0.0
    %129 = vmatpush.msra.mxu0 0.0
    %130 = vmatpush.msra.mxu0 0.0
    %131 = vmatpush.msra.mxu0 0.0
    %132 = vmatpush.msra.mxu0 0.0
    %133 = vmatpush.msra.mxu0 %v64
    %134 = vmatmul.f32.gmra.mxu0 %v84
    %v135 = vpop.f32.mrf.mxu0
    %v136 = vadd.f32 %v70, %v135
    %137 = vmatmul.f32.gmra.mxu0 %v87
    %v138 = vpop.f32.mrf.mxu0
    %v139 = vadd.f32 %v75, %v138
    %140 = vmatmul.f32.gmra.mxu0 %v90
    %v141 = vpop.f32.mrf.mxu0
    %v142 = vadd.f32 %v80, %v141
    %143 = vdwg.mxu0
    %144 = vmatpush.msra.mxu0 0.0
    %145 = vmatpush.msra.mxu0 0.0
    %146 = vmatpush.msra.mxu0 0.0
    %147 = vmatpush.msra.mxu0 0.0
    %148 = vmatpush.msra.mxu0 0.0
    %149 = vmatpush.msra.mxu0 0.0
    %150 = vmatpush.msra.mxu0 0.0
    %151 = vmatpush.msra.mxu0 0.0
    %152 = vmatpush.msra.mxu0 0.0
    %153 = vmatpush.msra.mxu0 0.0
    %154 = vmatpush.msra.mxu0 0.0
    %155 = vmatpush.msra.mxu0 0.0
    %156 = vmatpush.msra.mxu0 0.0
    %157 = vmatpush.msra.mxu0 0.0
    %158 = vmatpush.msra.mxu0 0.0
    %159 = vmatpush.msra.mxu0 %v65
    %160 = vmatmul.f32.gmra.mxu0 %v84
    %v161 = vpop.f32.mrf.mxu0
    %v162 = vadd.f32 %v70, %v161
    %163 = vmatmul.f32.gmra.mxu0 %v87
    %v164 = vpop.f32.mrf.mxu0
    %v165 = vadd.f32 %v75, %v164
    %166 = vmatmul.f32.gmra.mxu0 %v90
    %v167 = vpop.f32.mrf.mxu0
    %v168 = vadd.f32 %v80, %v167
    %169 = vdwg.mxu0
    %170 = vmatpush.msra.mxu0 0.0
    %171 = vmatpush.msra.mxu0 0.0
    %172 = vmatpush.msra.mxu0 0.0
    %173 = vmatpush.msra.mxu0 0.0
    %174 = vmatpush.msra.mxu0 0.0
    %175 = vmatpush.msra.mxu0 0.0
    %176 = vmatpush.msra.mxu0 0.0
    %177 = vmatpush.msra.mxu0 0.0
    %178 = vmatpush.msra.mxu0 0.0
    %179 = vmatpush.msra.mxu0 0.0
    %180 = vmatpush.msra.mxu0 0.0
    %181 = vmatpush.msra.mxu0 0.0
    %182 = vmatpush.msra.mxu0 0.0
    %183 = vmatpush.msra.mxu0 0.0
    %184 = vmatpush.msra.mxu0 0.0
    %185 = vmatpush.msra.mxu0 %v66
    %186 = vmatmul.f32.gmra.mxu0 %v84
    %v187 = vpop.f32.mrf.mxu0
    %v188 = vadd.f32 %v70, %v187
    %189 = vmatmul.f32.gmra.mxu0 %v87
    %v190 = vpop.f32.mrf.mxu0
    %v191 = vadd.f32 %v75, %v190
    %192 = vmatmul.f32.gmra.mxu0 %v90
    %v193 = vpop.f32.mrf.mxu0
    %v194 = vadd.f32 %v80, %v193
    %195 = vdwg.mxu0
    %v196 = vtanh.pop %v110
    %v197 = vtanh.pop %v136
    %v198 = vtanh.pop %v162
    %v199 = vtanh.pop %v188
    %v200 = vtanh.pop %v113
    %v201 = vtanh.pop %v139
    %v202 = vtanh.pop %v165
    %v203 = vtanh.pop %v191
    %v204 = vtanh.pop %v116
    %v205 = vtanh.pop %v142
    %v206 = vtanh.pop %v168
    %v207 = vtanh.pop %v194
    %209 = vset.pattern.permute.xlu0 0
    %210 = vperm.xlu0 %209, %v40
    %v211 = vpop.permute.xlu0 %210
    %214 = vset.pattern.permute.xlu0 0
    %215 = vperm.xlu0 %214, %v41
    %v216 = vpop.permute.xlu0 %215
    %219 = vset.pattern.permute.xlu0 0
    %220 = vperm.xlu0 %219, %v42
    %v221 = vpop.permute.xlu0 %220
    %vm223 = vcmask 195584
    %v225 = vsel %vm223, %v36, 0
    %v228 = vsel %vm223, %v37, 0
    %v231 = vsel %vm223, %v38, 0
    %233 = vmatpush.msra.mxu0 0.0
    %234 = vmatpush.msra.mxu0 0.0
    %235 = vmatpush.msra.mxu0 0.0
    %236 = vmatpush.msra.mxu0 0.0
    %237 = vmatpush.msra.mxu0 0.0
    %238 = vmatpush.msra.mxu0 0.0
    %239 = vmatpush.msra.mxu0 0.0
    %240 = vmatpush.msra.mxu0 0.0
    %241 = vmatpush.msra.mxu0 0.0
    %242 = vmatpush.msra.mxu0 0.0
    %243 = vmatpush.msra.mxu0 0.0
    %244 = vmatpush.msra.mxu0 0.0
    %245 = vmatpush.msra.mxu0 0.0
    %246 = vmatpush.msra.mxu0 %v204
    %247 = vmatpush.msra.mxu0 %v200
    %248 = vmatpush.msra.mxu0 %v196
    %249 = vmatmul.f32.gmra.mxu0 %v225
    %v250 = vpop.f32.mrf.mxu0
    %v251 = vadd.f32 %v211, %v250
    %252 = vmatmul.f32.gmra.mxu0 %v228
    %v253 = vpop.f32.mrf.mxu0
    %v254 = vadd.f32 %v216, %v253
    %255 = vmatmul.f32.gmra.mxu0 %v231
    %v256 = vpop.f32.mrf.mxu0
    %v257 = vadd.f32 %v221, %v256
    %258 = vdwg.mxu0
    %259 = vmatpush.msra.mxu0 0.0
    %260 = vmatpush.msra.mxu0 0.0
    %261 = vmatpush.msra.mxu0 0.0
    %262 = vmatpush.msra.mxu0 0.0
    %263 = vmatpush.msra.mxu0 0.0
    %264 = vmatpush.msra.mxu0 0.0
    %265 = vmatpush.msra.mxu0 0.0
    %266 = vmatpush.msra.mxu0 0.0
    %267 = vmatpush.msra.mxu0 0.0
    %268 = vmatpush.msra.mxu0 0.0
    %269 = vmatpush.msra.mxu0 0.0
    %270 = vmatpush.msra.mxu0 0.0
    %271 = vmatpush.msra.mxu0 0.0
    %272 = vmatpush.msra.mxu0 %v205
    %273 = vmatpush.msra.mxu0 %v201
    %274 = vmatpush.msra.mxu0 %v197
    %275 = vmatmul.f32.gmra.mxu0 %v225
    %v276 = vpop.f32.mrf.mxu0
    %v277 = vadd.f32 %v211, %v276
    %278 = vmatmul.f32.gmra.mxu0 %v228
    %v279 = vpop.f32.mrf.mxu0
    %v280 = vadd.f32 %v216, %v279
    %281 = vmatmul.f32.gmra.mxu0 %v231
    %v282 = vpop.f32.mrf.mxu0
    %v283 = vadd.f32 %v221, %v282
    %284 = vdwg.mxu0
    %285 = vmatpush.msra.mxu0 0.0
    %286 = vmatpush.msra.mxu0 0.0
    %287 = vmatpush.msra.mxu0 0.0
    %288 = vmatpush.msra.mxu0 0.0
    %289 = vmatpush.msra.mxu0 0.0
    %290 = vmatpush.msra.mxu0 0.0
    %291 = vmatpush.msra.mxu0 0.0
    %292 = vmatpush.msra.mxu0 0.0
    %293 = vmatpush.msra.mxu0 0.0
    %294 = vmatpush.msra.mxu0 0.0
    %295 = vmatpush.msra.mxu0 0.0
    %296 = vmatpush.msra.mxu0 0.0
    %297 = vmatpush.msra.mxu0 0.0
    %298 = vmatpush.msra.mxu0 %v206
    %299 = vmatpush.msra.mxu0 %v202
    %300 = vmatpush.msra.mxu0 %v198
    %301 = vmatmul.f32.gmra.mxu0 %v225
    %v302 = vpop.f32.mrf.mxu0
    %v303 = vadd.f32 %v211, %v302
    %304 = vmatmul.f32.gmra.mxu0 %v228
    %v305 = vpop.f32.mrf.mxu0
    %v306 = vadd.f32 %v216, %v305
    %307 = vmatmul.f32.gmra.mxu0 %v231
    %v308 = vpop.f32.mrf.mxu0
    %v309 = vadd.f32 %v221, %v308
    %310 = vdwg.mxu0
    %311 = vmatpush.msra.mxu0 0.0
    %312 = vmatpush.msra.mxu0 0.0
    %313 = vmatpush.msra.mxu0 0.0
    %314 = vmatpush.msra.mxu0 0.0
    %315 = vmatpush.msra.mxu0 0.0
    %316 = vmatpush.msra.mxu0 0.0
    %317 = vmatpush.msra.mxu0 0.0
    %318 = vmatpush.msra.mxu0 0.0
    %319 = vmatpush.msra.mxu0 0.0
    %320 = vmatpush.msra.mxu0 0.0
    %321 = vmatpush.msra.mxu0 0.0
    %322 = vmatpush.msra.mxu0 0.0
    %323 = vmatpush.msra.mxu0 0.0
    %324 = vmatpush.msra.mxu0 %v207
    %325 = vmatpush.msra.mxu0 %v203
    %326 = vmatpush.msra.mxu0 %v199
    %327 = vmatmul.f32.gmra.mxu0 %v225
    %v328 = vpop.f32.mrf.mxu0
    %v329 = vadd.f32 %v211, %v328
    %330 = vmatmul.f32.gmra.mxu0 %v228
    %v331 = vpop.f32.mrf.mxu0
    %v332 = vadd.f32 %v216, %v331
    %333 = vmatmul.f32.gmra.mxu0 %v231
    %v334 = vpop.f32.mrf.mxu0
    %v335 = vadd.f32 %v221, %v334
    %336 = vdwg.mxu0
    %v337 = vtanh.pop %v251
    %v338 = vtanh.pop %v277
    %v339 = vtanh.pop %v303
    %v340 = vtanh.pop %v329
    %v341 = vtanh.pop %v254
    %v342 = vtanh.pop %v280
    %v343 = vtanh.pop %v306
    %v344 = vtanh.pop %v332
    %v345 = vtanh.pop %v257
    %v346 = vtanh.pop %v283
    %v347 = vtanh.pop %v309
    %v348 = vtanh.pop %v335
    %350 = vset.pattern.permute.xlu0 0
    %351 = vperm.xlu0 %350, %v48
    %v352 = vpop.permute.xlu0 %351
    %355 = vset.pattern.permute.xlu0 0
    %356 = vperm.xlu0 %355, %v49
    %v357 = vpop.permute.xlu0 %356
    %360 = vset.pattern.permute.xlu0 0
    %361 = vperm.xlu0 %360, %v50
    %v362 = vpop.permute.xlu0 %361
    %v365 = vsel %vm223, %v44, 0
    %v368 = vsel %vm223, %v45, 0
    %v371 = vsel %vm223, %v46, 0
    %373 = vmatpush.msra.mxu0 0.0
    %374 = vmatpush.msra.mxu0 0.0
    %375 = vmatpush.msra.mxu0 0.0
    %376 = vmatpush.msra.mxu0 0.0
    %377 = vmatpush.msra.mxu0 0.0
    %378 = vmatpush.msra.mxu0 0.0
    %379 = vmatpush.msra.mxu0 0.0
    %380 = vmatpush.msra.mxu0 0.0
    %381 = vmatpush.msra.mxu0 0.0
    %382 = vmatpush.msra.mxu0 0.0
    %383 = vmatpush.msra.mxu0 0.0
    %384 = vmatpush.msra.mxu0 0.0
    %385 = vmatpush.msra.mxu0 0.0
    %386 = vmatpush.msra.mxu0 %v345
    %387 = vmatpush.msra.mxu0 %v341
    %388 = vmatpush.msra.mxu0 %v337
    %389 = vmatmul.f32.gmra.mxu0 %v365
    %v390 = vpop.f32.mrf.mxu0
    %v391 = vadd.f32 %v352, %v390
    %392 = vmatmul.f32.gmra.mxu0 %v368
    %v393 = vpop.f32.mrf.mxu0
    %v394 = vadd.f32 %v357, %v393
    %395 = vmatmul.f32.gmra.mxu0 %v371
    %v396 = vpop.f32.mrf.mxu0
    %v397 = vadd.f32 %v362, %v396
    %398 = vdwg.mxu0
    %399 = vmatpush.msra.mxu0 0.0
    %400 = vmatpush.msra.mxu0 0.0
    %401 = vmatpush.msra.mxu0 0.0
    %402 = vmatpush.msra.mxu0 0.0
    %403 = vmatpush.msra.mxu0 0.0
    %404 = vmatpush.msra.mxu0 0.0
    %405 = vmatpush.msra.mxu0 0.0
    %406 = vmatpush.msra.mxu0 0.0
    %407 = vmatpush.msra.mxu0 0.0
    %408 = vmatpush.msra.mxu0 0.0
    %409 = vmatpush.msra.mxu0 0.0
    %410 = vmatpush.msra.mxu0 0.0
    %411 = vmatpush.msra.mxu0 0.0
    %412 = vmatpush.msra.mxu0 %v346
    %413 = vmatpush.msra.mxu0 %v342
    %414 = vmatpush.msra.mxu0 %v338
    %415 = vmatmul.f32.gmra.mxu0 %v365
    %v416 = vpop.f32.mrf.mxu0
    %v417 = vadd.f32 %v352, %v416
    %418 = vmatmul.f32.gmra.mxu0 %v368
    %v419 = vpop.f32.mrf.mxu0
    %v420 = vadd.f32 %v357, %v419
    %421 = vmatmul.f32.gmra.mxu0 %v371
    %v422 = vpop.f32.mrf.mxu0
    %v423 = vadd.f32 %v362, %v422
    %424 = vdwg.mxu0
    %425 = vmatpush.msra.mxu0 0.0
    %426 = vmatpush.msra.mxu0 0.0
    %427 = vmatpush.msra.mxu0 0.0
    %428 = vmatpush.msra.mxu0 0.0
    %429 = vmatpush.msra.mxu0 0.0
    %430 = vmatpush.msra.mxu0 0.0
    %431 = vmatpush.msra.mxu0 0.0
    %432 = vmatpush.msra.mxu0 0.0
    %433 = vmatpush.msra.mxu0 0.0
    %434 = vmatpush.msra.mxu0 0.0
    %435 = vmatpush.msra.mxu0 0.0
    %436 = vmatpush.msra.mxu0 0.0
    %437 = vmatpush.msra.mxu0 0.0
    %438 = vmatpush.msra.mxu0 %v347
    %439 = vmatpush.msra.mxu0 %v343
    %440 = vmatpush.msra.mxu0 %v339
    %441 = vmatmul.f32.gmra.mxu0 %v365
    %v442 = vpop.f32.mrf.mxu0
    %v443 = vadd.f32 %v352, %v442
    %444 = vmatmul.f32.gmra.mxu0 %v368
    %v445 = vpop.f32.mrf.mxu0
    %v446 = vadd.f32 %v357, %v445
    %447 = vmatmul.f32.gmra.mxu0 %v371
    %v448 = vpop.f32.mrf.mxu0
    %v449 = vadd.f32 %v362, %v448
    %450 = vdwg.mxu0
    %451 = vmatpush.msra.mxu0 0.0
    %452 = vmatpush.msra.mxu0 0.0
    %453 = vmatpush.msra.mxu0 0.0
    %454 = vmatpush.msra.mxu0 0.0
    %455 = vmatpush.msra.mxu0 0.0
    %456 = vmatpush.msra.mxu0 0.0
    %457 = vmatpush.msra.mxu0 0.0
    %458 = vmatpush.msra.mxu0 0.0
    %459 = vmatpush.msra.mxu0 0.0
    %460 = vmatpush.msra.mxu0 0.0
    %461 = vmatpush.msra.mxu0 0.0
    %462 = vmatpush.msra.mxu0 0.0
    %463 = vmatpush.msra.mxu0 0.0
    %464 = vmatpush.msra.mxu0 %v348
    %465 = vmatpush.msra.mxu0 %v344
    %466 = vmatpush.msra.mxu0 %v340
    %467 = vmatmul.f32.gmra.mxu0 %v365
    %v468 = vpop.f32.mrf.mxu0
    %v469 = vadd.f32 %v352, %v468
    %470 = vmatmul.f32.gmra.mxu0 %v368
    %v471 = vpop.f32.mrf.mxu0
    %v472 = vadd.f32 %v357, %v471
    %473 = vmatmul.f32.gmra.mxu0 %v371
    %v474 = vpop.f32.mrf.mxu0
    %v475 = vadd.f32 %v362, %v474
    %476 = vdwg.mxu0
    %v477 = vtanh.pop %v391
    %v478 = vtanh.pop %v417
    %v479 = vtanh.pop %v443
    %v480 = vtanh.pop %v469
    %v481 = vtanh.pop %v394
    %v482 = vtanh.pop %v420
    %v483 = vtanh.pop %v446
    %v484 = vtanh.pop %v472
    %v485 = vtanh.pop %v397
    %v486 = vtanh.pop %v423
    %v487 = vtanh.pop %v449
    %v488 = vtanh.pop %v475
    %490 = vset.pattern.permute.xlu0 0
    %491 = vperm.xlu0 %490, %v56
    %v492 = vpop.permute.xlu0 %491
    %495 = vset.pattern.permute.xlu0 0
    %496 = vperm.xlu0 %495, %v57
    %v497 = vpop.permute.xlu0 %496
    %500 = vset.pattern.permute.xlu0 0
    %501 = vperm.xlu0 %500, %v58
    %v502 = vpop.permute.xlu0 %501
    %v505 = vsel %vm223, %v52, 0
    %v508 = vsel %vm223, %v53, 0
    %v511 = vsel %vm223, %v54, 0
    %513 = vmatpush.msra.mxu0 0.0
    %514 = vmatpush.msra.mxu0 0.0
    %515 = vmatpush.msra.mxu0 0.0
    %516 = vmatpush.msra.mxu0 0.0
    %517 = vmatpush.msra.mxu0 0.0
    %518 = vmatpush.msra.mxu0 0.0
    %519 = vmatpush.msra.mxu0 0.0
    %520 = vmatpush.msra.mxu0 0.0
    %521 = vmatpush.msra.mxu0 0.0
    %522 = vmatpush.msra.mxu0 0.0
    %523 = vmatpush.msra.mxu0 0.0
    %524 = vmatpush.msra.mxu0 0.0
    %525 = vmatpush.msra.mxu0 0.0
    %526 = vmatpush.msra.mxu0 %v485
    %527 = vmatpush.msra.mxu0 %v481
    %528 = vmatpush.msra.mxu0 %v477
    %529 = vmatmul.f32.gmra.mxu0 %v505
    %v530 = vpop.f32.mrf.mxu0
    %v531 = vadd.f32 %v492, %v530
    %532 = vmatmul.f32.gmra.mxu0 %v508
    %v533 = vpop.f32.mrf.mxu0
    %v534 = vadd.f32 %v497, %v533
    %535 = vmatmul.f32.gmra.mxu0 %v511
    %v536 = vpop.f32.mrf.mxu0
    %v537 = vadd.f32 %v502, %v536
    %538 = vdwg.mxu0
    %539 = vmatpush.msra.mxu0 0.0
    %540 = vmatpush.msra.mxu0 0.0
    %541 = vmatpush.msra.mxu0 0.0
    %542 = vmatpush.msra.mxu0 0.0
    %543 = vmatpush.msra.mxu0 0.0
    %544 = vmatpush.msra.mxu0 0.0
    %545 = vmatpush.msra.mxu0 0.0
    %546 = vmatpush.msra.mxu0 0.0
    %547 = vmatpush.msra.mxu0 0.0
    %548 = vmatpush.msra.mxu0 0.0
    %549 = vmatpush.msra.mxu0 0.0
    %550 = vmatpush.msra.mxu0 0.0
    %551 = vmatpush.msra.mxu0 0.0
    %552 = vmatpush.msra.mxu0 %v486
    %553 = vmatpush.msra.mxu0 %v482
    %554 = vmatpush.msra.mxu0 %v478
    %555 = vmatmul.f32.gmra.mxu0 %v505
    %v556 = vpop.f32.mrf.mxu0
    %v557 = vadd.f32 %v492, %v556
    %558 = vmatmul.f32.gmra.mxu0 %v508
    %v559 = vpop.f32.mrf.mxu0
    %v560 = vadd.f32 %v497, %v559
    %561 = vmatmul.f32.gmra.mxu0 %v511
    %v562 = vpop.f32.mrf.mxu0
    %v563 = vadd.f32 %v502, %v562
    %564 = vdwg.mxu0
    %565 = vmatpush.msra.mxu0 0.0
    %566 = vmatpush.msra.mxu0 0.0
    %567 = vmatpush.msra.mxu0 0.0
    %568 = vmatpush.msra.mxu0 0.0
    %569 = vmatpush.msra.mxu0 0.0
    %570 = vmatpush.msra.mxu0 0.0
    %571 = vmatpush.msra.mxu0 0.0
    %572 = vmatpush.msra.mxu0 0.0
    %573 = vmatpush.msra.mxu0 0.0
    %574 = vmatpush.msra.mxu0 0.0
    %575 = vmatpush.msra.mxu0 0.0
    %576 = vmatpush.msra.mxu0 0.0
    %577 = vmatpush.msra.mxu0 0.0
    %578 = vmatpush.msra.mxu0 %v487
    %579 = vmatpush.msra.mxu0 %v483
    %580 = vmatpush.msra.mxu0 %v479
    %581 = vmatmul.f32.gmra.mxu0 %v505
    %v582 = vpop.f32.mrf.mxu0
    %v583 = vadd.f32 %v492, %v582
    %584 = vmatmul.f32.gmra.mxu0 %v508
    %v585 = vpop.f32.mrf.mxu0
    %v586 = vadd.f32 %v497, %v585
    %587 = vmatmul.f32.gmra.mxu0 %v511
    %v588 = vpop.f32.mrf.mxu0
    %v589 = vadd.f32 %v502, %v588
    %590 = vdwg.mxu0
    %591 = vmatpush.msra.mxu0 0.0
    %592 = vmatpush.msra.mxu0 0.0
    %593 = vmatpush.msra.mxu0 0.0
    %594 = vmatpush.msra.mxu0 0.0
    %595 = vmatpush.msra.mxu0 0.0
    %596 = vmatpush.msra.mxu0 0.0
    %597 = vmatpush.msra.mxu0 0.0
    %598 = vmatpush.msra.mxu0 0.0
    %599 = vmatpush.msra.mxu0 0.0
    %600 = vmatpush.msra.mxu0 0.0
    %601 = vmatpush.msra.mxu0 0.0
    %602 = vmatpush.msra.mxu0 0.0
    %603 = vmatpush.msra.mxu0 0.0
    %604 = vmatpush.msra.mxu0 %v488
    %605 = vmatpush.msra.mxu0 %v484
    %606 = vmatpush.msra.mxu0 %v480
    %607 = vmatmul.f32.gmra.mxu0 %v505
    %v608 = vpop.f32.mrf.mxu0
    %v609 = vadd.f32 %v492, %v608
    %610 = vmatmul.f32.gmra.mxu0 %v508
    %v611 = vpop.f32.mrf.mxu0
    %v612 = vadd.f32 %v497, %v611
    %613 = vmatmul.f32.gmra.mxu0 %v511
    %v614 = vpop.f32.mrf.mxu0
    %v615 = vadd.f32 %v502, %v614
    %616 = vdwg.mxu0
    %v617 = vtanh.pop %v531
    %v618 = vtanh.pop %v557
    %v619 = vtanh.pop %v583
    %v620 = vtanh.pop %v609
    %v621 = vtanh.pop %v534
    %v622 = vtanh.pop %v560
    %v623 = vtanh.pop %v586
    %v624 = vtanh.pop %v612
    %v625 = vtanh.pop %v537
    %v626 = vtanh.pop %v563
    %v627 = vtanh.pop %v589
    %v628 = vtanh.pop %v615
    %630 = vset.pattern.permute.xlu0 0
    %631 = vperm.xlu0 %630, %v62
    %v632 = vpop.permute.xlu0 %631
    %v635 = vsel %vm223, %v60, 0
    %637 = vmatpush.msra.mxu0 0.0
    %638 = vmatpush.msra.mxu0 0.0
    %639 = vmatpush.msra.mxu0 0.0
    %640 = vmatpush.msra.mxu0 0.0
    %641 = vmatpush.msra.mxu0 0.0
    %642 = vmatpush.msra.mxu0 0.0
    %643 = vmatpush.msra.mxu0 0.0
    %644 = vmatpush.msra.mxu0 0.0
    %645 = vmatpush.msra.mxu0 0.0
    %646 = vmatpush.msra.mxu0 0.0
    %647 = vmatpush.msra.mxu0 0.0
    %648 = vmatpush.msra.mxu0 0.0
    %649 = vmatpush.msra.mxu0 0.0
    %650 = vmatpush.msra.mxu0 %v625
    %651 = vmatpush.msra.mxu0 %v621
    %652 = vmatpush.msra.mxu0 %v617
    %653 = vmatmul.f32.gmra.mxu0 %v635
    %v654 = vpop.f32.mrf.mxu0
    %v655 = vadd.f32 %v632, %v654
    %656 = vdwg.mxu0
    %657 = vmatpush.msra.mxu0 0.0
    %658 = vmatpush.msra.mxu0 0.0
    %659 = vmatpush.msra.mxu0 0.0
    %660 = vmatpush.msra.mxu0 0.0
    %661 = vmatpush.msra.mxu0 0.0
    %662 = vmatpush.msra.mxu0 0.0
    %663 = vmatpush.msra.mxu0 0.0
    %664 = vmatpush.msra.mxu0 0.0
    %665 = vmatpush.msra.mxu0 0.0
    %666 = vmatpush.msra.mxu0 0.0
    %667 = vmatpush.msra.mxu0 0.0
    %668 = vmatpush.msra.mxu0 0.0
    %669 = vmatpush.msra.mxu0 0.0
    %670 = vmatpush.msra.mxu0 %v626
    %671 = vmatpush.msra.mxu0 %v622
    %672 = vmatpush.msra.mxu0 %v618
    %673 = vmatmul.f32.gmra.mxu0 %v635
    %v674 = vpop.f32.mrf.mxu0
    %v675 = vadd.f32 %v632, %v674
    %676 = vdwg.mxu0
    %677 = vmatpush.msra.mxu0 0.0
    %678 = vmatpush.msra.mxu0 0.0
    %679 = vmatpush.msra.mxu0 0.0
    %680 = vmatpush.msra.mxu0 0.0
    %681 = vmatpush.msra.mxu0 0.0
    %682 = vmatpush.msra.mxu0 0.0
    %683 = vmatpush.msra.mxu0 0.0
    %684 = vmatpush.msra.mxu0 0.0
    %685 = vmatpush.msra.mxu0 0.0
    %686 = vmatpush.msra.mxu0 0.0
    %687 = vmatpush.msra.mxu0 0.0
    %688 = vmatpush.msra.mxu0 0.0
    %689 = vmatpush.msra.mxu0 0.0
    %690 = vmatpush.msra.mxu0 %v627
    %691 = vmatpush.msra.mxu0 %v623
    %692 = vmatpush.msra.mxu0 %v619
    %693 = vmatmul.f32.gmra.mxu0 %v635
    %v694 = vpop.f32.mrf.mxu0
    %v695 = vadd.f32 %v632, %v694
    %696 = vdwg.mxu0
    %697 = vmatpush.msra.mxu0 0.0
    %698 = vmatpush.msra.mxu0 0.0
    %699 = vmatpush.msra.mxu0 0.0
    %700 = vmatpush.msra.mxu0 0.0
    %701 = vmatpush.msra.mxu0 0.0
    %702 = vmatpush.msra.mxu0 0.0
    %703 = vmatpush.msra.mxu0 0.0
    %704 = vmatpush.msra.mxu0 0.0
    %705 = vmatpush.msra.mxu0 0.0
    %706 = vmatpush.msra.mxu0 0.0
    %707 = vmatpush.msra.mxu0 0.0
    %708 = vmatpush.msra.mxu0 0.0
    %709 = vmatpush.msra.mxu0 0.0
    %710 = vmatpush.msra.mxu0 %v628
    %711 = vmatpush.msra.mxu0 %v624
    %712 = vmatpush.msra.mxu0 %v620
    %713 = vmatmul.f32.gmra.mxu0 %v635
    %v714 = vpop.f32.mrf.mxu0
    %v715 = vadd.f32 %v632, %v714
    %716 = vdwg.mxu0
    %v717 = vtanh.pop %v655
    %v718 = vtanh.pop %v675
    %v719 = vtanh.pop %v695
    %v720 = vtanh.pop %v715
    %721 = vst [vmem:[#allocation5] sm:$0xff] %v717
    %722 = vst [vmem:[#allocation5 + $0x8] sm:$0xff] %v718
    %723 = vst [vmem:[#allocation5 + $0x10] sm:$0xff] %v719
    %724 = vst [vmem:[#allocation5 + $0x18] sm:$0xff] %v720
    // Predicated region
    $region18: #{tpu_custom_call.1} parent=1 // pred_check
      _
    $region19: #{tpu_custom_call.1} parent=1 // pred_check_branch
      %726 = sbr.rel (0) target = $region21
    $region20: #{tpu_custom_call.1} parent=1 // pred_region
      %728 = vsyncadd [#allocation4], 0
      %s730 = sshll.u32 [#allocation5], 4
      %s731 = int_to_ptr.vmem [resolvable:$true] %s730
      %s732 = sshll.u32 %s3, 4
      %s733 = int_to_ptr.hbm [resolvable:$true] %s732
      %735 = dma.vmem_to_hbm [thread:$0]  %s731, 512, %s733, [#allocation4]
    $region21: #{tpu_custom_call.1} parent=1 // pred_fallthru
      _
    // Predicated region
    $region22: #{tpu_custom_call.1} parent=1 // pred_check
      _
    $region23: #{tpu_custom_call.1} parent=1 // pred_check_branch
      %737 = sbr.rel (0) target = $region25
    $region24: #{tpu_custom_call.1} parent=1 // pred_region
      %739 = dma.done [#allocation4], 512
    $region25: #{tpu_custom_call.1} parent=1 // pred_fallthru
      _
    %740 = vsyncpa [#allocation3], 1
    %741 = vsyncpa [#allocation4], 1

</llo_original>
